<compile_context>
chip_gen: v7x
topology: tpu7x:2x2x1
jax: 0.10.0
libtpu: 0.0.40
codegen_flags: <defaults>
</compile_context>

<pallas_src>
import functools
import math

import jax
import jax.numpy as jnp
from jax.experimental import pallas as pl
from jax.experimental.pallas import tpu as pltpu


_NEG_INF = -1e30  # finite "minus infinity": exp() underflows to exactly 0.0


# ---------------------------------------------------------------------------
# SimpleAttention forward (batched):
#   out = softmax((utter @ W) @ history^T) @ history
# ---------------------------------------------------------------------------
def _simple_attention_kernel(utter_ref, w_ref, state_ref, packed_ref):
    """One grid step = one VMEM-resident batch tile of queries.

    utter_ref:  (bB, d_utter)   VMEM, f32
    w_ref:      (d_utter, D)    VMEM, f32
    state_ref:  (T, D)          VMEM, f32 (full state; last "now" row is masked)
    packed_ref: (bB, D + P)     VMEM, f32
                lanes [0, D)      -> attention output
                lanes [D, D+T)    -> alpha over all T slots (slot T-1 weighs 0)
                lanes [D+T, D+P)  -> zero padding (keeps the store lane-dense)
    """
    t = state_ref.shape[0]
    d = state_ref.shape[1]
    pad = packed_ref.shape[1] - d - t

    utter = utter_ref[...]          # already f32; no redundant astype
    w = w_ref[...]
    state = state_ref[...]

    # Project the utterances into context space (MXU): (bB, d_utter) @ (d_utter, D)
    proj = jnp.dot(utter, w, preferred_element_type=jnp.float32)          # (bB, D)

    # Scores against every memory slot: contract on the feature axis
    # (q @ K^T style dot_general, no materialized transpose).
    scores = jax.lax.dot_general(
        proj, state,
        dimension_numbers=(((1,), (1,)), ((), ())),
        preferred_element_type=jnp.float32)                               # (bB, T)

    # Fuse history() = state[:-1]: mask the last ("now") slot instead of
    # slicing T-1 rows, so every tile stays (8, 128)-aligned.
    slot = jax.lax.broadcasted_iota(jnp.int32, scores.shape, dimension=1)
    scores = jnp.where(slot < t - 1, scores, _NEG_INF)

    # Numerically-stable softmax over the slot axis.
    m = jnp.max(scores, axis=-1, keepdims=True)
    e = jnp.exp(scores - m)
    alpha = e / jnp.sum(e, axis=-1, keepdims=True)                        # (bB, T)

    # Attention-weighted sum of history rows (MXU); masked slot weighs 0.
    out = jnp.dot(alpha, state, preferred_element_type=jnp.float32)       # (bB, D)

    # Pack [out | alpha | 0-pad] into one lane-dense slab -> one unmasked
    # (multiple-of-128-lane) store and a single output writeback DMA.
    pieces = [out, alpha]
    if pad > 0:
        pieces.append(jnp.zeros((alpha.shape[0], pad), jnp.float32))
    packed_ref[...] = jnp.concatenate(pieces, axis=1)


def _attention_pallas(utter2d, w_alpha, state):
    b, d_utter = utter2d.shape
    t, d = state.shape

    # Alpha lanes padded up to a multiple of 128 so the packed output is lane-dense.
    alpha_lanes = ((t + 127) // 128) * 128
    packed_w = d + alpha_lanes

    # Batch tiling: at most two grid steps.  When B is a multiple of 16 the two
    # "parallel" steps map one per TensorCore on v7x (free 2x); otherwise a
    # single full-batch block (grid overhead ~0.35us/step, so keep steps few).
    if b % 16 == 0:
        bb = b // 2
    else:
        bb = b
    grid = (b // bb,)

    return pl.pallas_call(
        _simple_attention_kernel,
        out_shape=jax.ShapeDtypeStruct((b, packed_w), jnp.float32),
        grid=grid,
        in_specs=[
            pl.BlockSpec((bb, d_utter), lambda i: (i, 0)),   # per-step batch tile
            pl.BlockSpec((d_utter, d), lambda i: (0, 0)),    # W_alpha (resident)
            pl.BlockSpec((t, d), lambda i: (0, 0)),          # state   (resident)
        ],
        out_specs=pl.BlockSpec((bb, packed_w), lambda i: (i, 0)),
        compiler_params=pltpu.CompilerParams(
            dimension_semantics=("parallel",)),
    )(utter2d, w_alpha, state)


def _simple_attention_forward(utter, w_alpha, state):
    t, d = state.shape
    assert t >= 2, "SharedMemory needs at least one history slot (T >= 2)"

    single = utter.ndim == 1
    utter2d = utter.reshape(1, -1) if single else utter

    packed = _attention_pallas(utter2d, w_alpha, state)
    out = packed[:, :d]                   # (B, D)
    alpha = packed[:, d:d + t - 1]        # (B, T-1): weights over history()

    if single:
        return out[0], alpha[0]
    return out, alpha


simple_attention_forward = jax.jit(_simple_attention_forward)


# ---------------------------------------------------------------------------
# SharedMemory update: new_state = concat([state[:-1], next_[None]], axis=0)
# Per perf review: only the last row changes, so a donated dynamic_update_slice
# is a single in-place 512 B write with no Pallas custom-call or staging DMA.
# ---------------------------------------------------------------------------
@functools.partial(jax.jit, donate_argnums=(0,))
def shared_memory_update(state, next_):
    t = state.shape[0]
    return jax.lax.dynamic_update_slice(state, next_[None, :], (t - 1, 0))


# ---------------------------------------------------------------------------
# Module wrappers (functional ports of the PyTorch modules)
# ---------------------------------------------------------------------------
class SharedMemory:
    """Functional port of the PyTorch SharedMemory tensor-wrapper module."""

    def __init__(self, tensor):
        self.state = tensor  # non-trainable buffer (nn.Parameter, requires_grad=False)

    def history(self):
        return self.state[:-1]

    def now(self):
        return self.state[-1]

    def forward(self, next_):
        # TODO(synk): PyTorch writes `torch.concat(self.state[:-1], next_)`, which
        # is not valid torch; we follow the evident intent (drop the "now" slot,
        # append next_) and, since JAX is functional, rebind self.state to the
        # (donated, in-place) update instead of mutating a parameter.
        self.state = shared_memory_update(self.state, next_)
        return self.state


class SimpleAttention:
    """Functional port of the PyTorch SimpleAttention module (batch-capable)."""

    def __init__(self, d_utter, context: SharedMemory, key):
        self.context = context
        self.d_utter = d_utter
        self.d_context = context.state.shape[1]
        self.d_attention = context.state.shape[0] - 1
        self.alpha = jnp.ones((self.d_attention,), jnp.float32)
        # TODO(synk): the PyTorch __init__ references undefined attributes
        # (d_global / dutter / d_globa) and a broken gain expression; the only
        # shape that lets the forward compose is W_alpha: (d_utter, d_context),
        # initialized Xavier-uniform with gain=1.
        limit = math.sqrt(6.0 / (d_utter + self.d_context))
        self.W_alpha = jax.random.uniform(
            key, (d_utter, self.d_context), jnp.float32, -limit, limit)

    def forward(self, utter):
        # utter: (d_utter,) -> out (D,);  utter: (B, d_utter) -> out (B, D)
        out, alpha = simple_attention_forward(utter, self.W_alpha, self.context.state)
        self.alpha = alpha  # PyTorch re-assigns self.alpha inside forward
        return out


# ---------------------------------------------------------------------------
# Reference + demo
# ---------------------------------------------------------------------------
def _reference_attention(utter, w_alpha, state):
    """Pure-JAX (highest precision) reference of the intended forward."""
    hist = state[:-1]
    proj = jnp.dot(utter, w_alpha, precision=jax.lax.Precision.HIGHEST)
    scores = jnp.dot(proj, hist.T, precision=jax.lax.Precision.HIGHEST)
    alpha = jax.nn.softmax(scores)
    out = jnp.dot(alpha, hist, precision=jax.lax.Precision.HIGHEST)
    return out, alpha


if __name__ == "__main__":
    T, D, D_UTTER, B = 8, 128, 32, 16   # 8 slots, 128 context feats, 32-dim utter, batch 16

    key = jax.random.PRNGKey(0)
    k_state, k_next, k_utter, k_batch, k_w = jax.random.split(key, 5)
    init_state = jax.random.normal(k_state, (T, D), dtype=jnp.float32)
    next_ = jax.random.normal(k_next, (D,), dtype=jnp.float32)
    utter = jax.random.normal(k_utter, (D_UTTER,), dtype=jnp.float32)
    utter_batch = jax.random.normal(k_batch, (B, D_UTTER), dtype=jnp.float32)

    mem = SharedMemory(init_state)
    attn = SimpleAttention(D_UTTER, mem, k_w)

    # Pure-JAX references, computed BEFORE the update donates init_state.
    ref_out0, ref_alpha0 = _reference_attention(utter, attn.W_alpha, init_state)
    ref_outb, ref_alphab = jax.vmap(
        _reference_attention, in_axes=(0, None, None))(utter_batch, attn.W_alpha, init_state)
    ref_new_state = jnp.concatenate([init_state[:-1], next_[None]], axis=0)
    ref_out1, ref_alpha1 = _reference_attention(utter, attn.W_alpha, ref_new_state)

    tol = dict(atol=1e-3, rtol=1e-3)

    # 1) single-utterance attention over the initial shared memory
    out0 = jax.block_until_ready(attn.forward(utter))
    assert out0.shape == (D,) and attn.alpha.shape == (T - 1,)
    assert jnp.allclose(out0, ref_out0, **tol), "attention output mismatch (single)"
    assert jnp.allclose(attn.alpha, ref_alpha0, **tol), "attention weights mismatch (single)"

    # 2) batched attention (B queries, 2 "parallel" grid steps -> v7x megacore split)
    outb = jax.block_until_ready(attn.forward(utter_batch))
    assert outb.shape == (B, D) and attn.alpha.shape == (B, T - 1)
    assert jnp.allclose(outb, ref_outb, **tol), "attention output mismatch (batched)"
    assert jnp.allclose(attn.alpha, ref_alphab, **tol), "attention weights mismatch (batched)"

    # 3) shared-memory update (donated in-place single-row write)
    new_state = jax.block_until_ready(mem.forward(next_))
    assert new_state.shape == (T, D)
    assert jnp.array_equal(new_state, ref_new_state), "shared-memory update mismatch"
    assert jnp.array_equal(mem.now(), next_)
    assert jnp.array_equal(mem.history(), ref_new_state[:-1])

    # 4) attention over the updated shared memory
    out1 = jax.block_until_ready(attn.forward(utter))
    assert jnp.allclose(out1, ref_out1, **tol), "attention output mismatch (updated state)"
    assert jnp.allclose(attn.alpha, ref_alpha1, **tol), "attention weights mismatch (updated state)"

    print("KERNEL_OK")
</pallas_src>

<mosaic_0001>
module attributes {stable_mosaic.version = 11 : i64} {
  func.func @_simple_attention_kernel(%arg0: i32, %arg1: memref<1x32xf32, #tpu.memory_space<vmem>>, %arg2: memref<32x128xf32, #tpu.memory_space<vmem>>, %arg3: memref<8x128xf32, #tpu.memory_space<vmem>>, %arg4: memref<1x256xf32, #tpu.memory_space<vmem>>) attributes {dimension_semantics = [#tpu.dimension_semantics<parallel>], iteration_bounds = array<i64: 1>, scalar_prefetch = 0 : i64, scratch_operands = 0 : i64, tpu.core_type = #tpu.core_type<tc>, window_params = [{transform_indices = @transform_0, window_bounds = array<i64: 1, 32>}, {pipeline_mode = #tpu.pipeline_mode<synchronous>, transform_indices = @transform_1, window_bounds = array<i64: 32, 128>}, {pipeline_mode = #tpu.pipeline_mode<synchronous>, transform_indices = @transform_2, window_bounds = array<i64: 8, 128>}, {transform_indices = @transform_3, window_bounds = array<i64: 1, 256>}]} {
    %c0 = arith.constant 0 : index
    %c0_0 = arith.constant 0 : index
    %0 = vector.load %arg1[%c0, %c0_0] : memref<1x32xf32, #tpu.memory_space<vmem>>, vector<1x32xf32>
    %c0_1 = arith.constant 0 : index
    %c0_2 = arith.constant 0 : index
    %1 = vector.load %arg2[%c0_1, %c0_2] : memref<32x128xf32, #tpu.memory_space<vmem>>, vector<32x128xf32>
    %c0_3 = arith.constant 0 : index
    %c0_4 = arith.constant 0 : index
    %2 = vector.load %arg3[%c0_3, %c0_4] : memref<8x128xf32, #tpu.memory_space<vmem>>, vector<8x128xf32>
    %cst = arith.constant dense<0.000000e+00> : vector<1x128xf32>
    %3 = tpu.matmul %0, %1, %cst {dimension_numbers = #tpu.dot_dimension_numbers<[1], [0], [0], [1], [0, 0, 1, 1], [], []>} : vector<1x32xf32>, vector<32x128xf32>, vector<1x128xf32> -> vector<1x128xf32>
    %cst_5 = arith.constant dense<0.000000e+00> : vector<1x8xf32>
    %4 = tpu.matmul %3, %2, %cst_5 {dimension_numbers = #tpu.dot_dimension_numbers<[1], [1], [0], [0], [0, 0, 1, 0], [], []>} : vector<1x128xf32>, vector<8x128xf32>, vector<1x8xf32> -> vector<1x8xf32>
    %5 = tpu.iota {dimensions = array<i32: 1>} : vector<1x8xi32>
    %c7_i32 = arith.constant 7 : i32
    %6 = vector.broadcast %c7_i32 : i32 to vector<1x8xi32>
    %7 = arith.cmpi slt, %5, %6 : vector<1x8xi32>
    %cst_6 = arith.constant -1.000000e+30 : f32
    %8 = vector.broadcast %cst_6 : f32 to vector<1x8xf32>
    %9 = arith.select %7, %4, %8 : vector<1x8xi1>, vector<1x8xf32>
    %cst_7 = arith.constant dense<0xFF800000> : vector<1xf32>
    %10 = vector.multi_reduction <maximumf>, %9, %cst_7 [1] : vector<1x8xf32> to vector<1xf32>
    %11 = vector.shape_cast %10 : vector<1xf32> to vector<1x1xf32>
    %12 = vector.broadcast %11 : vector<1x1xf32> to vector<1x8xf32>
    %13 = arith.subf %9, %12 : vector<1x8xf32>
    %14 = math.exp %13 : vector<1x8xf32>
    %cst_8 = arith.constant dense<0.000000e+00> : vector<1xf32>
    %15 = vector.multi_reduction <add>, %14, %cst_8 [1] : vector<1x8xf32> to vector<1xf32>
    %16 = vector.shape_cast %15 : vector<1xf32> to vector<1x1xf32>
    %17 = vector.broadcast %16 : vector<1x1xf32> to vector<1x8xf32>
    %18 = arith.divf %14, %17 : vector<1x8xf32>
    %cst_9 = arith.constant dense<0.000000e+00> : vector<1x128xf32>
    %19 = tpu.matmul %18, %2, %cst_9 {dimension_numbers = #tpu.dot_dimension_numbers<[1], [0], [0], [1], [0, 0, 1, 1], [], []>} : vector<1x8xf32>, vector<8x128xf32>, vector<1x128xf32> -> vector<1x128xf32>
    %cst_10 = arith.constant 0.000000e+00 : f32
    %20 = vector.broadcast %cst_10 : f32 to vector<1x120xf32>
    %21 = tpu.concatenate %19, %18, %20 in 1 : vector<1x128xf32>, vector<1x8xf32>, vector<1x120xf32> -> vector<1x256xf32>
    %c0_11 = arith.constant 0 : index
    %c0_12 = arith.constant 0 : index
    %22 = vector.load %arg4[%c0_11, %c0_12] : memref<1x256xf32, #tpu.memory_space<vmem>>, vector<1x256xf32>
    tpu.vector_store %arg4[%c0_11, %c0_12], %21 {strides = array<i32>} : memref<1x256xf32, #tpu.memory_space<vmem>>, vector<1x256xf32>,
    return
  }
  func.func @transform_0(%arg0: i32) -> (i32, i32) {
    %c0_i32 = arith.constant 0 : i32
    %c0_i32_0 = arith.constant 0 : i32
    return %arg0, %c0_i32 : i32, i32
  }
  func.func @transform_1(%arg0: i32) -> (i32, i32) {
    %c0_i32 = arith.constant 0 : i32
    %c0_i32_0 = arith.constant 0 : i32
    %c0_i32_1 = arith.constant 0 : i32
    return %c0_i32, %c0_i32_0 : i32, i32
  }
  func.func @transform_2(%arg0: i32) -> (i32, i32) {
    %c0_i32 = arith.constant 0 : i32
    %c0_i32_0 = arith.constant 0 : i32
    %c0_i32_1 = arith.constant 0 : i32
    return %c0_i32, %c0_i32_0 : i32, i32
  }
  func.func @transform_3(%arg0: i32) -> (i32, i32) {
    %c0_i32 = arith.constant 0 : i32
    %c0_i32_0 = arith.constant 0 : i32
    return %arg0, %c0_i32 : i32, i32
  }
}

</mosaic_0001>

<llo_original>
// kernel: _simple_attention_forward.1
$region0: #{_simple_attention_forward.1}
  #allocation0 [shape = 'u32[]', space=smem, size = 0x4, offset = 0x4, fixed_abs, tag = 'smem constant byte address 0x4 - core index']
  #allocation1 [shape = 'u32[144,128]{1,0:T(1,128)}', space=vmem, size = 0x12000, scoped, tag = 'internal scratch']
  %s0 = inlined_call_operand.vmem [shape: f32[1,32], index: 0, kind: input, shape index: {}]
  %s1 = inlined_call_operand.hbm [shape: f32[32,128], index: 1, kind: input, shape index: {}]
  %s2 = inlined_call_operand.vmem [shape: f32[8,128], index: 2, kind: input, shape index: {}]
  %s3 = inlined_call_operand.vmem [shape: f32[1,256], index: 3, kind: output, shape index: {}]
  %s4 = sld [smem:[#allocation0]]
  $region26: #{_simple_attention_forward.1} parent=0
    _
  %s6 = ssub.s32 1, %s4
  %s7 = scalar_select 0, %s6, %s4
  $region1: #{_simple_attention_forward.1} parent=0
    #allocation2 [shape = 'u8[16384]{0}', space=vmem, size = 0x4000, scoped, tag = 'input window, operand 1, single buffered']
    #allocation3 [shape = 's32[1]{0}', space=sflag, size = 0x4, scoped, tag = 'scoped memory for _simple_attention_forward.1']
    %8 = vsyncpa [#allocation3], 0
    // Predicated region
    $region2: #{_simple_attention_forward.1} parent=1 // pred_check
      _
    $region3: #{_simple_attention_forward.1} parent=1 // pred_check_branch
      %10 = sbr.rel (0) target = $region5
    $region4: #{_simple_attention_forward.1} parent=1 // pred_region
      _
    $region5: #{_simple_attention_forward.1} parent=1 // pred_fallthru
      _
    // Predicated region
    $region6: #{_simple_attention_forward.1} parent=1 // pred_check
      _
    $region7: #{_simple_attention_forward.1} parent=1 // pred_check_branch
      %12 = sbr.rel (0) target = $region9
    $region8: #{_simple_attention_forward.1} parent=1 // pred_region
      %s14 = ssub.s32 512, 512
      %15 = vsyncadd [#allocation3], %s14
      %s16 = sshll.u32 [#allocation2], 4
      %s17 = int_to_ptr.vmem [resolvable:$true] %s16
      %22 = dma.hbm_to_vmem [thread:$0]  %s1, 512, %s17, [#allocation3], 128, 128, 8
    $region9: #{_simple_attention_forward.1} parent=1 // pred_fallthru
      _
    // Predicated region
    $region10: #{_simple_attention_forward.1} parent=1 // pred_check
      _
    $region11: #{_simple_attention_forward.1} parent=1 // pred_check_branch
      %24 = sbr.rel (0) target = $region13
    $region12: #{_simple_attention_forward.1} parent=1 // pred_region
      _
    $region13: #{_simple_attention_forward.1} parent=1 // pred_fallthru
      _
    // Predicated region
    $region14: #{_simple_attention_forward.1} parent=1 // pred_check
      _
    $region15: #{_simple_attention_forward.1} parent=1 // pred_check_branch
      %26 = sbr.rel (0) target = $region17
    $region16: #{_simple_attention_forward.1} parent=1 // pred_region
      %27 = dma.done [#allocation3], 512
    $region17: #{_simple_attention_forward.1} parent=1 // pred_fallthru
      _
    %v28 = vld [vmem:[%s0] sm:$0x1]
    %v29 = vld [vmem:[#allocation2] sm:$0xff]
    %v30 = vld [vmem:[#allocation2 + $0x8] sm:$0xff]
    %v31 = vld [vmem:[#allocation2 + $0x10] sm:$0xff]
    %v32 = vld [vmem:[#allocation2 + $0x18] sm:$0xff]
    %v33 = vld [vmem:[%s2] sm:$0xff]
    %vm34 = vcmask 261120
    %v36 = vsel %vm34, %v28, 0
    %38 = vmatprep.subr.mxu0 0.0
    %39 = vmatpush1.msra.mxu0 %v29
    %40 = vmatprep.subr.mxu0 0.0
    %41 = vmatpush1.msra.mxu0 %v30
    %42 = vmatprep.subr.mxu0 0.0
    %43 = vmatpush1.msra.mxu0 %v31
    %44 = vmatprep.subr.mxu0 0.0
    %45 = vmatpush1.msra.mxu0 %v32
    %46 = vmatprep.subr.mxu0 0.0
    %47 = vmatpush1.msra.mxu0 0.0
    %48 = vmatprep.subr.mxu0 0.0
    %49 = vmatpush1.msra.mxu0 0.0
    %50 = vmatprep.subr.mxu0 0.0
    %51 = vmatpush1.msra.mxu0 0.0
    %52 = vmatprep.subr.mxu0 0.0
    %53 = vmatpush1.msra.mxu0 0.0
    %54 = vmatprep.subr.mxu0 0.0
    %55 = vmatpush1.msra.mxu0 0.0
    %56 = vmatprep.subr.mxu0 0.0
    %57 = vmatpush1.msra.mxu0 0.0
    %58 = vmatprep.subr.mxu0 0.0
    %59 = vmatpush1.msra.mxu0 0.0
    %60 = vmatprep.subr.mxu0 0.0
    %61 = vmatpush1.msra.mxu0 0.0
    %62 = vmatprep.subr.mxu0 0.0
    %63 = vmatpush1.msra.mxu0 0.0
    %64 = vmatprep.subr.mxu0 0.0
    %65 = vmatpush1.msra.mxu0 0.0
    %66 = vmatprep.subr.mxu0 0.0
    %67 = vmatpush1.msra.mxu0 0.0
    %68 = vmatprep.subr.mxu0 0.0
    %69 = vmatpush1.msra.mxu0 0.0
    %70 = vmatprep.subr.mxu0 0.0
    %71 = vmatpush1.msra.mxu0 0.0
    %72 = vmatprep.subr.mxu0 0.0
    %73 = vmatpush1.msra.mxu0 0.0
    %74 = vmatprep.subr.mxu0 0.0
    %75 = vmatpush1.msra.mxu0 0.0
    %76 = vmatprep.subr.mxu0 0.0
    %77 = vmatpush1.msra.mxu0 0.0
    %78 = vmatprep.subr.mxu0 0.0
    %79 = vmatpush1.msra.mxu0 0.0
    %80 = vmatprep.subr.mxu0 0.0
    %81 = vmatpush1.msra.mxu0 0.0
    %82 = vmatprep.subr.mxu0 0.0
    %83 = vmatpush1.msra.mxu0 0.0
    %84 = vmatprep.subr.mxu0 0.0
    %85 = vmatpush1.msra.mxu0 0.0
    %86 = vmatprep.subr.mxu0 0.0
    %87 = vmatpush1.msra.mxu0 0.0
    %88 = vmatprep.subr.mxu0 0.0
    %89 = vmatpush1.msra.mxu0 0.0
    %90 = vmatprep.subr.mxu0 0.0
    %91 = vmatpush1.msra.mxu0 0.0
    %92 = vmatprep.subr.mxu0 0.0
    %93 = vmatpush1.msra.mxu0 0.0
    %94 = vmatprep.subr.mxu0 0.0
    %95 = vmatpush1.msra.mxu0 0.0
    %96 = vmatprep.subr.mxu0 0.0
    %97 = vmatpush1.msra.mxu0 0.0
    %98 = vmatprep.subr.mxu0 0.0
    %99 = vmatpush1.msra.mxu0 0.0
    %100 = vmatprep.subr.mxu0 0.0
    %101 = vmatpush1.msra.mxu0 0.0
    %102 = vmatprep.mubr.f32.mxu0 0.0
    %103 = vmatmul.mubr.f32.gmra.mrb[0].mxu0 %v36
    %v104 = vpop.f32.mrb[0].mxu0
    %v105 = vadd.f32 0.0, %v104
    %v106 = vpop.f32.mrb[0].mxu0
    %107 = vdwg.mxu0
    %108 = vmatprep.subr.mxu0 0.0
    %109 = vmatpush1.xpose.msra.mxu0 %v33
    %110 = vmatprep.subr.mxu0 0.0
    %111 = vmatpush1.xpose.msra.mxu0 0.0
    %112 = vmatprep.subr.mxu0 0.0
    %113 = vmatpush1.xpose.msra.mxu0 0.0
    %114 = vmatprep.subr.mxu0 0.0
    %115 = vmatpush1.xpose.msra.mxu0 0.0
    %116 = vmatprep.subr.mxu0 0.0
    %117 = vmatpush1.xpose.msra.mxu0 0.0
    %118 = vmatprep.subr.mxu0 0.0
    %119 = vmatpush1.xpose.msra.mxu0 0.0
    %120 = vmatprep.subr.mxu0 0.0
    %121 = vmatpush1.xpose.msra.mxu0 0.0
    %122 = vmatprep.subr.mxu0 0.0
    %123 = vmatpush1.xpose.msra.mxu0 0.0
    %124 = vmatprep.subr.mxu0 0.0
    %125 = vmatpush1.xpose.msra.mxu0 0.0
    %126 = vmatprep.subr.mxu0 0.0
    %127 = vmatpush1.xpose.msra.mxu0 0.0
    %128 = vmatprep.subr.mxu0 0.0
    %129 = vmatpush1.xpose.msra.mxu0 0.0
    %130 = vmatprep.subr.mxu0 0.0
    %131 = vmatpush1.xpose.msra.mxu0 0.0
    %132 = vmatprep.subr.mxu0 0.0
    %133 = vmatpush1.xpose.msra.mxu0 0.0
    %134 = vmatprep.subr.mxu0 0.0
    %135 = vmatpush1.xpose.msra.mxu0 0.0
    %136 = vmatprep.subr.mxu0 0.0
    %137 = vmatpush1.xpose.msra.mxu0 0.0
    %138 = vmatprep.subr.mxu0 0.0
    %139 = vmatpush1.xpose.msra.mxu0 0.0
    %140 = vmatprep.subr.mxu0 0.0
    %141 = vmatpush1.xpose.msra.mxu0 0.0
    %142 = vmatprep.subr.mxu0 0.0
    %143 = vmatpush1.xpose.msra.mxu0 0.0
    %144 = vmatprep.subr.mxu0 0.0
    %145 = vmatpush1.xpose.msra.mxu0 0.0
    %146 = vmatprep.subr.mxu0 0.0
    %147 = vmatpush1.xpose.msra.mxu0 0.0
    %148 = vmatprep.subr.mxu0 0.0
    %149 = vmatpush1.xpose.msra.mxu0 0.0
    %150 = vmatprep.subr.mxu0 0.0
    %151 = vmatpush1.xpose.msra.mxu0 0.0
    %152 = vmatprep.subr.mxu0 0.0
    %153 = vmatpush1.xpose.msra.mxu0 0.0
    %154 = vmatprep.subr.mxu0 0.0
    %155 = vmatpush1.xpose.msra.mxu0 0.0
    %156 = vmatprep.subr.mxu0 0.0
    %157 = vmatpush1.xpose.msra.mxu0 0.0
    %158 = vmatprep.subr.mxu0 0.0
    %159 = vmatpush1.xpose.msra.mxu0 0.0
    %160 = vmatprep.subr.mxu0 0.0
    %161 = vmatpush1.xpose.msra.mxu0 0.0
    %162 = vmatprep.subr.mxu0 0.0
    %163 = vmatpush1.xpose.msra.mxu0 0.0
    %164 = vmatprep.subr.mxu0 0.0
    %165 = vmatpush1.xpose.msra.mxu0 0.0
    %166 = vmatprep.subr.mxu0 0.0
    %167 = vmatpush1.xpose.msra.mxu0 0.0
    %168 = vmatprep.subr.mxu0 0.0
    %169 = vmatpush1.xpose.msra.mxu0 0.0
    %170 = vmatprep.subr.mxu0 0.0
    %171 = vmatpush1.xpose.msra.mxu0 0.0
    %172 = vmatprep.mubr.f32.mxu0 0.0
    %173 = vmatmul.mubr.f32.gmra.mrb[0].mxu0 %v105
    %v174 = vpop.f32.mrb[0].mxu0
    %v175 = vadd.f32 0.0, %v174
    %v176 = vpop.f32.mrb[0].mxu0
    %177 = vdwg.mxu0
    %v178 = vlaneseq
    %v179 = vand.u32 %v178, 127
    %vm180 = vcmp.lt.s32.totalorder %v179, 7
    %v181 = vsel %vm180, %v175, -1e+30
    %vm182 = vcmask 57344
    %v183 = vsel %vm182, %v181, -inf
    %184 = vmax.xlane.f32.xlu0 %v183
    %v185 = vpop.xlane.xlu0 %184
    %v186 = vsub.f32 %v181, %v185
    %v187 = vmul.f32 %v186, 1.442695
    %v188 = vpow.pop %v187
    %v189 = vsel %vm182, %v188, 0.0
    %190 = vadd.xlane.f32.xlu0 %v189
    %v191 = vpop.xlane.xlu0 %190
    %v192 = vrcp.pop %v191
    %v193 = vmul.f32 %v188, %v192
    %vm194 = vcmask 64512
    %v196 = vsel %vm194, %v193, 0
    %198 = vmatprep.subr.mxu0 0.0
    %199 = vmatpush1.msra.mxu0 %v33
    %200 = vmatprep.subr.mxu0 0.0
    %201 = vmatpush1.msra.mxu0 0.0
    %202 = vmatprep.subr.mxu0 0.0
    %203 = vmatpush1.msra.mxu0 0.0
    %204 = vmatprep.subr.mxu0 0.0
    %205 = vmatpush1.msra.mxu0 0.0
    %206 = vmatprep.subr.mxu0 0.0
    %207 = vmatpush1.msra.mxu0 0.0
    %208 = vmatprep.subr.mxu0 0.0
    %209 = vmatpush1.msra.mxu0 0.0
    %210 = vmatprep.subr.mxu0 0.0
    %211 = vmatpush1.msra.mxu0 0.0
    %212 = vmatprep.subr.mxu0 0.0
    %213 = vmatpush1.msra.mxu0 0.0
    %214 = vmatprep.subr.mxu0 0.0
    %215 = vmatpush1.msra.mxu0 0.0
    %216 = vmatprep.subr.mxu0 0.0
    %217 = vmatpush1.msra.mxu0 0.0
    %218 = vmatprep.subr.mxu0 0.0
    %219 = vmatpush1.msra.mxu0 0.0
    %220 = vmatprep.subr.mxu0 0.0
    %221 = vmatpush1.msra.mxu0 0.0
    %222 = vmatprep.subr.mxu0 0.0
    %223 = vmatpush1.msra.mxu0 0.0
    %224 = vmatprep.subr.mxu0 0.0
    %225 = vmatpush1.msra.mxu0 0.0
    %226 = vmatprep.subr.mxu0 0.0
    %227 = vmatpush1.msra.mxu0 0.0
    %228 = vmatprep.subr.mxu0 0.0
    %229 = vmatpush1.msra.mxu0 0.0
    %230 = vmatprep.subr.mxu0 0.0
    %231 = vmatpush1.msra.mxu0 0.0
    %232 = vmatprep.subr.mxu0 0.0
    %233 = vmatpush1.msra.mxu0 0.0
    %234 = vmatprep.subr.mxu0 0.0
    %235 = vmatpush1.msra.mxu0 0.0
    %236 = vmatprep.subr.mxu0 0.0
    %237 = vmatpush1.msra.mxu0 0.0
    %238 = vmatprep.subr.mxu0 0.0
    %239 = vmatpush1.msra.mxu0 0.0
    %240 = vmatprep.subr.mxu0 0.0
    %241 = vmatpush1.msra.mxu0 0.0
    %242 = vmatprep.subr.mxu0 0.0
    %243 = vmatpush1.msra.mxu0 0.0
    %244 = vmatprep.subr.mxu0 0.0
    %245 = vmatpush1.msra.mxu0 0.0
    %246 = vmatprep.subr.mxu0 0.0
    %247 = vmatpush1.msra.mxu0 0.0
    %248 = vmatprep.subr.mxu0 0.0
    %249 = vmatpush1.msra.mxu0 0.0
    %250 = vmatprep.subr.mxu0 0.0
    %251 = vmatpush1.msra.mxu0 0.0
    %252 = vmatprep.subr.mxu0 0.0
    %253 = vmatpush1.msra.mxu0 0.0
    %254 = vmatprep.subr.mxu0 0.0
    %255 = vmatpush1.msra.mxu0 0.0
    %256 = vmatprep.subr.mxu0 0.0
    %257 = vmatpush1.msra.mxu0 0.0
    %258 = vmatprep.subr.mxu0 0.0
    %259 = vmatpush1.msra.mxu0 0.0
    %260 = vmatprep.subr.mxu0 0.0
    %261 = vmatpush1.msra.mxu0 0.0
    %262 = vmatprep.mubr.f32.mxu0 0.0
    %263 = vmatmul.mubr.f32.gmra.mrb[0].mxu0 %v196
    %v264 = vpop.f32.mrb[0].mxu0
    %v265 = vadd.f32 0.0, %v264
    %v266 = vpop.f32.mrb[0].mxu0
    %267 = vdwg.mxu0
    %v268 = vsel %vm194, %v193, 0.0
    %v271 = vcombine.low %v265, %v268
    %v273 = vunpack.c.l.s4 1966171168
    %v274 = vunpack.c.0.s8 %v273
    %v275 = vlaneseq
    %v276 = vshrl.u32 %v275, 7
    %v277 = vsub.s32 %v274, %v276
    %v278 = vrot.slane %v271, %v277
    %v280 = vunpack.c.l.s4 1966171168
    %v281 = vunpack.c.0.s8 %v280
    %v282 = vlaneseq
    %v283 = vshrl.u32 %v282, 7
    %v284 = vsub.s32 %v281, %v283
    %v285 = vrot.slane %v278, %v284
    %v287 = vlaneseq
    %vm288 = vcmp.ge.s32.totalorder %v287, 0
    %vm289 = vcmp.lt.s32.totalorder %v287, 256
    %vm290 = vmand %vm288, %vm289
    %291 = vst.msk [vmem:[%s3] sm:$0x3] %vm290, %v285
    // Predicated region
    $region18: #{_simple_attention_forward.1} parent=1 // pred_check
      _
    $region19: #{_simple_attention_forward.1} parent=1 // pred_check_branch
      %293 = sbr.rel (0) target = $region21
    $region20: #{_simple_attention_forward.1} parent=1 // pred_region
      _
    $region21: #{_simple_attention_forward.1} parent=1 // pred_fallthru
      _
    // Predicated region
    $region22: #{_simple_attention_forward.1} parent=1 // pred_check
      _
    $region23: #{_simple_attention_forward.1} parent=1 // pred_check_branch
      %295 = sbr.rel (0) target = $region25
    $region24: #{_simple_attention_forward.1} parent=1 // pred_region
      _
    $region25: #{_simple_attention_forward.1} parent=1 // pred_fallthru
      _
    %296 = vsyncpa [#allocation3], 1

</llo_original>
